<compile_context>
chip_gen: v7x
topology: tpu7x:2x2x1
jax: 0.10.0
libtpu: 0.0.40
codegen_flags: <defaults>
</compile_context>

<pallas_src>
import jax
import jax.numpy as jnp
from jax.experimental import pallas as pl
from jax.experimental.pallas import tpu as pltpu

LN_EPS = 1e-12  # BERT default layer_norm_eps
_ROW_ALIGN = 8  # sublane granularity


def _self_output_kernel(x_ref, res_ref, wt_ref, lnp_ref, o_ref):
    # Dense: x @ W^T in the model dtype (bf16 operands stay on the MXU-native
    # path), f32 accumulation via preferred_element_type.
    y = jnp.dot(x_ref[...], wt_ref[...], preferred_element_type=jnp.float32)

    lnp = lnp_ref[...]  # (3, H) f32 resident block: [bias; gamma; beta]
    bias, gamma, beta = lnp[0:1, :], lnp[1:2, :], lnp[2:3, :]

    # bias + dropout (identity, eval mode) + residual; f32 epilogue only.
    # TODO(synk): training-mode dropout (RNG mask) not implemented.
    h = y + bias + res_ref[...].astype(jnp.float32)

    # LayerNorm over the last dim (population variance, as in nn.LayerNorm).
    mean = jnp.mean(h, axis=-1, keepdims=True)
    cen = h - mean
    var = jnp.mean(cen * cen, axis=-1, keepdims=True)
    norm = cen * jax.lax.rsqrt(var + LN_EPS)
    o_ref[...] = (norm * gamma + beta).astype(o_ref.dtype)


def _vmem_limit_bytes():
    """Per-TC VMEM limit we hand to the compiler (leaves ~25% headroom)."""
    try:
        cap = int(pltpu.get_tpu_info().vmem_capacity_bytes)  # per-core VMEM
    except Exception:
        cap = 64 * 1024 * 1024  # conservative default (v7x per-TC VMEM)
    return min((cap * 3) // 4, 100 * 1024 * 1024)


def _pick_row_tile(M, H, act_itemsize, w_itemsize, vmem_limit_bytes):
    """Largest row tile from {128,...,2048} that fits the VMEM budget.

    Accounts for: 3 double-buffered (TM,H) DMA tiles (x, residual, out) in the
    activation dtype, ~4 f32 (TM,H) epilogue temporaries (accumulator, h, cen,
    normalized), and the resident W^T counted at 2x in case single-buffering is
    unavailable on this runtime.
    """
    budget = int(vmem_limit_bytes * 0.6)
    w_bytes = 2 * H * H * w_itemsize
    avail = max(budget - w_bytes, 1 << 20)
    per_row = 3 * 2 * H * act_itemsize + 4 * H * 4
    rows = avail // per_row
    tm = 128  # keep multiples of 128 (MXU / lane-dense friendly on all gens)
    for cand in (256, 512, 1024, 2048):
        if cand <= rows:
            tm = cand
    return tm


def _round_up(x, m):
    return ((x + m - 1) // m) * m


def _two_core_friendly(M, tile_m):
    """Ensure >=2 (ideally even) grid steps so both v7x TCs get work.

    Free on single-TC chips (v5e/v6e): a couple of extra ~0.35us grid steps.
    """
    if M < 2 * _ROW_ALIGN:
        return tile_m
    if tile_m >= M:  # single-block grid -> split into two row tiles
        tile_m = _round_up(pl.cdiv(M, 2), _ROW_ALIGN)
    steps = pl.cdiv(M, tile_m)
    if steps > 1 and steps % 2 == 1:  # one attempt at an even step count
        cand = _round_up(pl.cdiv(M, steps + 1), _ROW_ALIGN)
        if cand >= _ROW_ALIGN and pl.cdiv(M, cand) % 2 == 0:
            tile_m = cand
    return tile_m


def bert_self_output(hidden_states, input_tensor, params, *, tile_m=None):
    """hidden_states, input_tensor: [B, S, H] -> [B, S, H]."""
    B, S, H = hidden_states.shape
    M = B * S
    x = hidden_states.reshape(M, H)
    res = input_tensor.reshape(M, H).astype(x.dtype)

    # Enforce that x and W^T share the model dtype (bf16 x bf16 stays on the
    # MXU-native path; a mismatched f32 weight would silently promote the dot).
    wt = params["dense_wt"].astype(x.dtype)  # [H, H], already W^T
    # bias / gamma / beta packed into a single (3, H) f32 resident block.
    ln_pack = jnp.stack(
        [params["dense_b"], params["ln_g"], params["ln_b"]], axis=0
    ).astype(jnp.float32)

    vmem_limit = _vmem_limit_bytes()
    if tile_m is None:
        tile_m = _pick_row_tile(M, H, x.dtype.itemsize, wt.dtype.itemsize,
                                vmem_limit)
    tile_m = min(tile_m, M)
    tile_m = _two_core_friendly(M, tile_m)
    grid = (pl.cdiv(M, tile_m),)

    cost = pl.CostEstimate(
        flops=2 * M * H * H,
        transcendentals=0,
        bytes_accessed=(3 * M * H * x.dtype.itemsize
                        + H * H * wt.dtype.itemsize + 3 * H * 4),
    )

    def build(single_buffer_resident):
        resident_kw = (
            dict(pipeline_mode=pl.Buffered(1)) if single_buffer_resident else {}
        )
        in_specs = [
            pl.BlockSpec((tile_m, H), lambda i: (i, 0)),            # x row tile
            pl.BlockSpec((tile_m, H), lambda i: (i, 0)),            # residual
            pl.BlockSpec((H, H), lambda i: (0, 0), **resident_kw),  # W^T
            pl.BlockSpec((3, H), lambda i: (0, 0), **resident_kw),  # b/gamma/beta
        ]
        return pl.pallas_call(
            _self_output_kernel,
            out_shape=jax.ShapeDtypeStruct((M, H), hidden_states.dtype),
            grid_spec=pltpu.PrefetchScalarGridSpec(
                num_scalar_prefetch=0,
                grid=grid,
                in_specs=in_specs,
                out_specs=pl.BlockSpec((tile_m, H), lambda i: (i, 0)),
            ),
            compiler_params=pltpu.CompilerParams(
                dimension_semantics=("parallel",),  # row tiles are independent
                vmem_limit_bytes=vmem_limit,
            ),
            cost_estimate=cost,
        )

    try:
        out = build(single_buffer_resident=True)(x, res, wt, ln_pack)
    except Exception:
        # pipeline_mode=pl.Buffered(1) unsupported on this jax/libtpu -> default
        # double-buffering (the VMEM model already budgeted W^T at 2x).
        out = build(single_buffer_resident=False)(x, res, wt, ln_pack)
    return out.reshape(B, S, H)


def init_params(key, hidden_size, dtype=jnp.bfloat16):
    """Weight stored pre-transposed (W^T, [in, out]) in the model dtype
    (bf16 by default => MXU-native, half the HBM bytes); LN params in f32."""
    k1, k2 = jax.random.split(key)
    scale = 1.0 / jnp.sqrt(hidden_size)
    return {
        "dense_wt": jax.random.uniform(k1, (hidden_size, hidden_size),
                                       jnp.float32, -scale, scale).astype(dtype),
        "dense_b": jax.random.uniform(k2, (hidden_size,),
                                      jnp.float32, -scale, scale),
        "ln_g": jnp.ones((hidden_size,), jnp.float32),
        "ln_b": jnp.zeros((hidden_size,), jnp.float32),
    }


def _reference(hidden_states, input_tensor, params, precision=None):
    x = hidden_states.astype(jnp.float32)
    r = input_tensor.astype(jnp.float32)
    w = params["dense_wt"].astype(jnp.float32)
    y = jnp.dot(x, w, precision=precision) + params["dense_b"].astype(jnp.float32)
    h = y + r
    mean = jnp.mean(h, axis=-1, keepdims=True)
    var = jnp.mean((h - mean) ** 2, axis=-1, keepdims=True)
    norm = (h - mean) * jax.lax.rsqrt(var + LN_EPS)
    return norm * params["ln_g"] + params["ln_b"]


if __name__ == "__main__":
    key = jax.random.PRNGKey(0)
    k_h, k_r, k_p, k2_h, k2_r, k2_p = jax.random.split(key, 6)

    # Test 1: tiny module-sized shape, f32 path (grid auto-split into 2 steps).
    B, S, H = 2, 8, 32
    hidden_states = jax.random.normal(k_h, (B, S, H), jnp.float32)
    input_tensor = jax.random.normal(k_r, (B, S, H), jnp.float32)
    params = init_params(k_p, H, dtype=jnp.float32)
    out = bert_self_output(hidden_states, input_tensor, params)
    jax.block_until_ready(out)
    ref = _reference(hidden_states, input_tensor, params)
    assert jnp.allclose(out, ref, atol=1e-5, rtol=1e-5)

    # Test 2: bf16 streamed operands, lane-dense H, auto tile (even grid).
    B2, S2, H2 = 2, 120, 256  # M=240 rows
    hs2 = jax.random.normal(k2_h, (B2, S2, H2), jnp.float32).astype(jnp.bfloat16)
    in2 = jax.random.normal(k2_r, (B2, S2, H2), jnp.float32).astype(jnp.bfloat16)
    params2 = init_params(k2_p, H2, dtype=jnp.bfloat16)
    ref2 = _reference(hs2, in2, params2, precision=jax.lax.Precision.HIGHEST)

    out2 = bert_self_output(hs2, in2, params2)  # auto tile -> grid of 2
    jax.block_until_ready(out2)
    assert jnp.allclose(out2.astype(jnp.float32), ref2, atol=2e-2, rtol=2e-2)

    # Test 3: ragged grid (M=240, tile=128 -> last block partially OOB, rows are
    # independent so masked writeback keeps results exact).
    out3 = bert_self_output(hs2, in2, params2, tile_m=128)
    jax.block_until_ready(out3)
    assert jnp.allclose(out3.astype(jnp.float32), ref2, atol=2e-2, rtol=2e-2)

    print("KERNEL_OK")
</pallas_src>

<mosaic_0001>
module attributes {stable_mosaic.version = 11 : i64} {
  func.func @_self_output_kernel(%arg0: i32, %arg1: memref<8x32xf32, #tpu.memory_space<vmem>>, %arg2: memref<8x32xf32, #tpu.memory_space<vmem>>, %arg3: memref<32x32xf32, #tpu.memory_space<vmem>>, %arg4: memref<3x32xf32, #tpu.memory_space<vmem>>, %arg5: memref<8x32xf32, #tpu.memory_space<vmem>>) attributes {dimension_semantics = [#tpu.dimension_semantics<parallel>], iteration_bounds = array<i64: 2>, scalar_prefetch = 0 : i64, scratch_operands = 0 : i64, tpu.core_type = #tpu.core_type<tc>, window_params = [{transform_indices = @transform_0, window_bounds = array<i64: 8, 32>}, {transform_indices = @transform_1, window_bounds = array<i64: 8, 32>}, {pipeline_mode = #tpu.pipeline_mode<synchronous>, transform_indices = @transform_2, window_bounds = array<i64: 32, 32>}, {pipeline_mode = #tpu.pipeline_mode<synchronous>, transform_indices = @transform_3, window_bounds = array<i64: 3, 32>}, {transform_indices = @transform_4, window_bounds = array<i64: 8, 32>}]} {
    %c0 = arith.constant 0 : index
    %c0_0 = arith.constant 0 : index
    %0 = vector.load %arg1[%c0, %c0_0] : memref<8x32xf32, #tpu.memory_space<vmem>>, vector<8x32xf32>
    %c0_1 = arith.constant 0 : index
    %c0_2 = arith.constant 0 : index
    %1 = vector.load %arg3[%c0_1, %c0_2] : memref<32x32xf32, #tpu.memory_space<vmem>>, vector<32x32xf32>
    %cst = arith.constant dense<0.000000e+00> : vector<8x32xf32>
    %2 = tpu.matmul %0, %1, %cst {dimension_numbers = #tpu.dot_dimension_numbers<[1], [0], [0], [1], [0, 0, 1, 1], [], []>} : vector<8x32xf32>, vector<32x32xf32>, vector<8x32xf32> -> vector<8x32xf32>
    %c0_3 = arith.constant 0 : index
    %c0_4 = arith.constant 0 : index
    %3 = vector.load %arg4[%c0_3, %c0_4] : memref<3x32xf32, #tpu.memory_space<vmem>>, vector<3x32xf32>
    %4 = vector.extract_strided_slice %3 {offsets = [0, 0], sizes = [1, 32], strides = [1, 1]} : vector<3x32xf32> to vector<1x32xf32>
    %5 = vector.extract_strided_slice %3 {offsets = [1, 0], sizes = [1, 32], strides = [1, 1]} : vector<3x32xf32> to vector<1x32xf32>
    %6 = vector.extract_strided_slice %3 {offsets = [2, 0], sizes = [1, 32], strides = [1, 1]} : vector<3x32xf32> to vector<1x32xf32>
    %7 = vector.broadcast %4 : vector<1x32xf32> to vector<8x32xf32>
    %8 = arith.addf %2, %7 : vector<8x32xf32>
    %c0_5 = arith.constant 0 : index
    %c0_6 = arith.constant 0 : index
    %9 = vector.load %arg2[%c0_5, %c0_6] : memref<8x32xf32, #tpu.memory_space<vmem>>, vector<8x32xf32>
    %10 = arith.addf %8, %9 : vector<8x32xf32>
    %cst_7 = arith.constant dense<0.000000e+00> : vector<8xf32>
    %11 = vector.multi_reduction <add>, %10, %cst_7 [1] : vector<8x32xf32> to vector<8xf32>
    %12 = vector.shape_cast %11 : vector<8xf32> to vector<8x1xf32>
    %cst_8 = arith.constant 3.200000e+01 : f32
    %13 = vector.broadcast %cst_8 : f32 to vector<8x1xf32>
    %14 = arith.divf %12, %13 : vector<8x1xf32>
    %15 = vector.broadcast %14 : vector<8x1xf32> to vector<8x32xf32>
    %16 = arith.subf %10, %15 : vector<8x32xf32>
    %17 = arith.mulf %16, %16 : vector<8x32xf32>
    %cst_9 = arith.constant dense<0.000000e+00> : vector<8xf32>
    %18 = vector.multi_reduction <add>, %17, %cst_9 [1] : vector<8x32xf32> to vector<8xf32>
    %19 = vector.shape_cast %18 : vector<8xf32> to vector<8x1xf32>
    %cst_10 = arith.constant 3.200000e+01 : f32
    %20 = vector.broadcast %cst_10 : f32 to vector<8x1xf32>
    %21 = arith.divf %19, %20 : vector<8x1xf32>
    %cst_11 = arith.constant 9.99999996E-13 : f32
    %22 = vector.broadcast %cst_11 : f32 to vector<8x1xf32>
    %23 = arith.addf %21, %22 : vector<8x1xf32>
    %24 = math.rsqrt %23 : vector<8x1xf32>
    %25 = vector.broadcast %24 : vector<8x1xf32> to vector<8x32xf32>
    %26 = arith.mulf %16, %25 : vector<8x32xf32>
    %27 = vector.broadcast %5 : vector<1x32xf32> to vector<8x32xf32>
    %28 = arith.mulf %26, %27 : vector<8x32xf32>
    %29 = vector.broadcast %6 : vector<1x32xf32> to vector<8x32xf32>
    %30 = arith.addf %28, %29 : vector<8x32xf32>
    %c0_12 = arith.constant 0 : index
    %c0_13 = arith.constant 0 : index
    %31 = vector.load %arg5[%c0_12, %c0_13] : memref<8x32xf32, #tpu.memory_space<vmem>>, vector<8x32xf32>
    tpu.vector_store %arg5[%c0_12, %c0_13], %30 {strides = array<i32>} : memref<8x32xf32, #tpu.memory_space<vmem>>, vector<8x32xf32>,
    return
  }
  func.func @transform_0(%arg0: i32) -> (i32, i32) {
    %c0_i32 = arith.constant 0 : i32
    %c0_i32_0 = arith.constant 0 : i32
    return %arg0, %c0_i32 : i32, i32
  }
  func.func @transform_1(%arg0: i32) -> (i32, i32) {
    %c0_i32 = arith.constant 0 : i32
    %c0_i32_0 = arith.constant 0 : i32
    return %arg0, %c0_i32 : i32, i32
  }
  func.func @transform_2(%arg0: i32) -> (i32, i32) {
    %c0_i32 = arith.constant 0 : i32
    %c0_i32_0 = arith.constant 0 : i32
    %c0_i32_1 = arith.constant 0 : i32
    return %c0_i32, %c0_i32_0 : i32, i32
  }
  func.func @transform_3(%arg0: i32) -> (i32, i32) {
    %c0_i32 = arith.constant 0 : i32
    %c0_i32_0 = arith.constant 0 : i32
    %c0_i32_1 = arith.constant 0 : i32
    return %c0_i32, %c0_i32_0 : i32, i32
  }
  func.func @transform_4(%arg0: i32) -> (i32, i32) {
    %c0_i32 = arith.constant 0 : i32
    %c0_i32_0 = arith.constant 0 : i32
    return %arg0, %c0_i32 : i32, i32
  }
}

module attributes {stable_mosaic.version = 11 : i64} {
  func.func @_self_output_kernel(%arg0: i32, %arg1: memref<8x32xf32, #tpu.memory_space<vmem>>, %arg2: memref<8x32xf32, #tpu.memory_space<vmem>>, %arg3: memref<32x32xf32, #tpu.memory_space<vmem>>, %arg4: memref<3x32xf32, #tpu.memory_space<vmem>>, %arg5: memref<8x32xf32, #tpu.memory_space<vmem>>) attributes {dimension_semantics = [#tpu.dimension_semantics<parallel>], iteration_bounds = array<i64: 2>, scalar_prefetch = 0 : i64, scratch_operands = 0 : i64, tpu.core_type = #tpu.core_type<tc>, window_params = [{transform_indices = @transform_0, window_bounds = array<i64: 8, 32>}, {transform_indices = @transform_1, window_bounds = array<i64: 8, 32>}, {pipeline_mode = #tpu.pipeline_mode<synchronous>, transform_indices = @transform_2, window_bounds = array<i64: 32, 32>}, {pipeline_mode = #tpu.pipeline_mode<synchronous>, transform_indices = @transform_3, window_bounds = array<i64: 3, 32>}, {transform_indices = @transform_4, window_bounds = array<i64: 8, 32>}]} {
    %c0 = arith.constant 0 : index
    %c0_0 = arith.constant 0 : index
    %0 = vector.load %arg1[%c0, %c0_0] : memref<8x32xf32, #tpu.memory_space<vmem>>, vector<8x32xf32>
    %c0_1 = arith.constant 0 : index
    %c0_2 = arith.constant 0 : index
    %1 = vector.load %arg3[%c0_1, %c0_2] : memref<32x32xf32, #tpu.memory_space<vmem>>, vector<32x32xf32>
    %cst = arith.constant dense<0.000000e+00> : vector<8x32xf32>
    %2 = tpu.matmul %0, %1, %cst {dimension_numbers = #tpu.dot_dimension_numbers<[1], [0], [0], [1], [0, 0, 1, 1], [], []>} : vector<8x32xf32>, vector<32x32xf32>, vector<8x32xf32> -> vector<8x32xf32>
    %c0_3 = arith.constant 0 : index
    %c0_4 = arith.constant 0 : index
    %3 = vector.load %arg4[%c0_3, %c0_4] : memref<3x32xf32, #tpu.memory_space<vmem>>, vector<3x32xf32>
    %4 = vector.extract_strided_slice %3 {offsets = [0, 0], sizes = [1, 32], strides = [1, 1]} : vector<3x32xf32> to vector<1x32xf32>
    %5 = vector.extract_strided_slice %3 {offsets = [1, 0], sizes = [1, 32], strides = [1, 1]} : vector<3x32xf32> to vector<1x32xf32>
    %6 = vector.extract_strided_slice %3 {offsets = [2, 0], sizes = [1, 32], strides = [1, 1]} : vector<3x32xf32> to vector<1x32xf32>
    %7 = vector.broadcast %4 : vector<1x32xf32> to vector<8x32xf32>
    %8 = arith.addf %2, %7 : vector<8x32xf32>
    %c0_5 = arith.constant 0 : index
    %c0_6 = arith.constant 0 : index
    %9 = vector.load %arg2[%c0_5, %c0_6] : memref<8x32xf32, #tpu.memory_space<vmem>>, vector<8x32xf32>
    %10 = arith.addf %8, %9 : vector<8x32xf32>
    %cst_7 = arith.constant dense<0.000000e+00> : vector<8xf32>
    %11 = vector.multi_reduction <add>, %10, %cst_7 [1] : vector<8x32xf32> to vector<8xf32>
    %12 = vector.shape_cast %11 : vector<8xf32> to vector<8x1xf32>
    %cst_8 = arith.constant 3.200000e+01 : f32
    %13 = vector.broadcast %cst_8 : f32 to vector<8x1xf32>
    %14 = arith.divf %12, %13 : vector<8x1xf32>
    %15 = vector.broadcast %14 : vector<8x1xf32> to vector<8x32xf32>
    %16 = arith.subf %10, %15 : vector<8x32xf32>
    %17 = arith.mulf %16, %16 : vector<8x32xf32>
    %cst_9 = arith.constant dense<0.000000e+00> : vector<8xf32>
    %18 = vector.multi_reduction <add>, %17, %cst_9 [1] : vector<8x32xf32> to vector<8xf32>
    %19 = vector.shape_cast %18 : vector<8xf32> to vector<8x1xf32>
    %cst_10 = arith.constant 3.200000e+01 : f32
    %20 = vector.broadcast %cst_10 : f32 to vector<8x1xf32>
    %21 = arith.divf %19, %20 : vector<8x1xf32>
    %cst_11 = arith.constant 9.99999996E-13 : f32
    %22 = vector.broadcast %cst_11 : f32 to vector<8x1xf32>
    %23 = arith.addf %21, %22 : vector<8x1xf32>
    %24 = math.rsqrt %23 : vector<8x1xf32>
    %25 = vector.broadcast %24 : vector<8x1xf32> to vector<8x32xf32>
    %26 = arith.mulf %16, %25 : vector<8x32xf32>
    %27 = vector.broadcast %5 : vector<1x32xf32> to vector<8x32xf32>
    %28 = arith.mulf %26, %27 : vector<8x32xf32>
    %29 = vector.broadcast %6 : vector<1x32xf32> to vector<8x32xf32>
    %30 = arith.addf %28, %29 : vector<8x32xf32>
    %c0_12 = arith.constant 0 : index
    %c0_13 = arith.constant 0 : index
    %31 = vector.load %arg5[%c0_12, %c0_13] : memref<8x32xf32, #tpu.memory_space<vmem>>, vector<8x32xf32>
    tpu.vector_store %arg5[%c0_12, %c0_13], %30 {strides = array<i32>} : memref<8x32xf32, #tpu.memory_space<vmem>>, vector<8x32xf32>,
    return
  }
  func.func @transform_0(%arg0: i32) -> (i32, i32) {
    %c0_i32 = arith.constant 0 : i32
    %c0_i32_0 = arith.constant 0 : i32
    return %arg0, %c0_i32 : i32, i32
  }
  func.func @transform_1(%arg0: i32) -> (i32, i32) {
    %c0_i32 = arith.constant 0 : i32
    %c0_i32_0 = arith.constant 0 : i32
    return %arg0, %c0_i32 : i32, i32
  }
  func.func @transform_2(%arg0: i32) -> (i32, i32) {
    %c0_i32 = arith.constant 0 : i32
    %c0_i32_0 = arith.constant 0 : i32
    %c0_i32_1 = arith.constant 0 : i32
    return %c0_i32, %c0_i32_0 : i32, i32
  }
  func.func @transform_3(%arg0: i32) -> (i32, i32) {
    %c0_i32 = arith.constant 0 : i32
    %c0_i32_0 = arith.constant 0 : i32
    %c0_i32_1 = arith.constant 0 : i32
    return %c0_i32, %c0_i32_0 : i32, i32
  }
  func.func @transform_4(%arg0: i32) -> (i32, i32) {
    %c0_i32 = arith.constant 0 : i32
    %c0_i32_0 = arith.constant 0 : i32
    return %arg0, %c0_i32 : i32, i32
  }
}

</mosaic_0001>

<llo_original>
// kernel: tpu_custom_call.1
$region0: #{tpu_custom_call.1}
  #allocation0 [shape = 'u32[]', space=smem, size = 0x4, offset = 0x4, fixed_abs, tag = 'smem constant byte address 0x4 - core index']
  #allocation1 [shape = 'u32[144,128]{1,0:T(1,128)}', space=vmem, size = 0x12000, scoped, tag = 'internal scratch']
  %s0 = inlined_call_operand.hbm [shape: f32[16,32], index: 0, kind: input, shape index: {}]
  %s1 = inlined_call_operand.hbm [shape: f32[16,32], index: 1, kind: input, shape index: {}]
  %s2 = inlined_call_operand.hbm [shape: f32[32,32], index: 2, kind: input, shape index: {}]
  %s3 = inlined_call_operand.vmem [shape: f32[3,32], index: 3, kind: input, shape index: {}]
  %s4 = inlined_call_operand.hbm [shape: f32[16,32], index: 4, kind: output, shape index: {}]
  %s5 = sld [smem:[#allocation0]]
  $region61: #{tpu_custom_call.1} parent=0
    _
  %s7 = ssub.s32 1, %s5
  %s8 = scalar_select 0, %s7, %s5
  $region1: #{tpu_custom_call.1} parent=0
    #allocation2 [shape = 'u8[8192]{0}', space=vmem, size = 0x2000, scoped, tag = 'input window, operand 0']
    #allocation3 [shape = 's32[2]{0}', space=sflag, size = 0x8, scoped, tag = 'scoped memory for tpu_custom_call.1']
    #allocation4 [shape = 's32[2]{0}', space=sflag, size = 0x8, scoped, tag = 'scoped memory for tpu_custom_call.1']
    #allocation5 [shape = 'u8[8192]{0}', space=vmem, size = 0x2000, scoped, tag = 'input window, operand 1']
    #allocation6 [shape = 's32[2]{0}', space=sflag, size = 0x8, scoped, tag = 'scoped memory for tpu_custom_call.1']
    #allocation7 [shape = 'u8[16384]{0}', space=vmem, size = 0x4000, scoped, tag = 'input window, operand 2, single buffered']
    #allocation8 [shape = 'u8[8192]{0}', space=vmem, size = 0x2000, scoped, tag = 'output window, operand 0']
    %9 = vsyncpa [#allocation3], 0
    %s10 = scalar_lea.sflag [#allocation3], 1
    %11 = vsyncpa %s10, 0
    %12 = vsyncpa [#allocation6], 0
    %s13 = scalar_lea.sflag [#allocation6], 1
    %14 = vsyncpa %s13, 0
    %15 = vsyncpa [#allocation4], 0
    %s16 = scalar_lea.sflag [#allocation4], 1
    %17 = vsyncpa %s16, 0
    loop: start=0, step=1, limit=4
    $region2: #{tpu_custom_call.1} parent=1 // loop_pre_header
      _
    $region3: #{tpu_custom_call.1} parent=1 // loop_header
      %s19 = sphi 0, %s23
      %p20 = scmp.ge.s32.totalorder %s19, 4
      %s29 = sphi 0, %s31
      %s32 = sphi 0, %s29
      %s33 = sphi 0, %s32
      %s49 = sphi 0, %s33
      %s55 = sphi 0, %s57
      %s58 = sphi 0, %s55
      %s59 = sphi 0, %s58
      %s75 = sphi 0, %s59
      %s79 = sphi 0, %s79
      %s81 = sphi 0, %s79
      %s82 = sphi 0, %s81
      %s96 = sphi 0, %s82
      %s100 = sphi 0, %s100
      %s102 = sphi 0, %s100
      %s103 = sphi 0, %s102
      %s117 = sphi 0, %s103
      %s123 = sphi 0, %s125
      %s126 = sphi 0, %s123
      %s127 = sphi 0, %s126
      %s143 = sphi 0, %s127
    $region4: #{tpu_custom_call.1} parent=1 // loop_header_branch
      %22 = sbr.rel (%p20) target = $region8
    $region5: #{tpu_custom_call.1} parent=1 // loop_body
      %s24 = ssub.s32 %s19, 1
      %s25 = ssub.s32 %s19, 2
      %s26 = sadd.s32 %s19, 1
      %s27 = ssub.s32 %s19, %s26
      %p28 = scmp.eq.s32.totalorder %s27, 0
      %s30 = sadd.s32 %s29, 1
      %s31 = scalar_select %p28, %s29, %s30
      %p34 = pneg %p28
      %p35 = scmp.eq.s32.totalorder %s19, 1
      %p36 = por %p34, %p35
      %p37 = scmp.ne.s32.totalorder %s29, %s32
      %p38 = scmp.eq.s32.totalorder %s19, 0
      %p39 = por %p37, %p38
      %p40 = scmp.ne.s32.totalorder %s29, %s32
      %p41 = scmp.eq.s32.totalorder %s24, 1
      %p42 = por %p40, %p41
      %p43 = scmp.ne.s32.totalorder %s32, %s33
      %p44 = scmp.eq.s32.totalorder %s24, 0
      %p45 = por %p43, %p44
      %p46 = scmp.ne.s32.totalorder %s32, %s33
      %p47 = scmp.eq.s32.totalorder %s25, 1
      %p48 = por %p46, %p47
      %p50 = scmp.ne.s32.totalorder %s33, %s49
      %p51 = scmp.eq.s32.totalorder %s25, 0
      %p52 = por %p50, %p51
      %s53 = ssub.s32 %s19, %s26
      %p54 = scmp.eq.s32.totalorder %s53, 0
      %s56 = sadd.s32 %s55, 1
      %s57 = scalar_select %p54, %s55, %s56
      %p60 = pneg %p54
      %p61 = scmp.eq.s32.totalorder %s19, 1
      %p62 = por %p60, %p61
      %p63 = scmp.ne.s32.totalorder %s55, %s58
      %p64 = scmp.eq.s32.totalorder %s19, 0
      %p65 = por %p63, %p64
      %p66 = scmp.ne.s32.totalorder %s55, %s58
      %p67 = scmp.eq.s32.totalorder %s24, 1
      %p68 = por %p66, %p67
      %p69 = scmp.ne.s32.totalorder %s58, %s59
      %p70 = scmp.eq.s32.totalorder %s24, 0
      %p71 = por %p69, %p70
      %p72 = scmp.ne.s32.totalorder %s58, %s59
      %p73 = scmp.eq.s32.totalorder %s25, 1
      %p74 = por %p72, %p73
      %p76 = scmp.ne.s32.totalorder %s59, %s75
      %p77 = scmp.eq.s32.totalorder %s25, 0
      %p78 = por %p76, %p77
      %s80 = sadd.s32 %s79, 1
      %p83 = scmp.eq.s32.totalorder %s19, 1
      %p84 = scmp.ne.s32.totalorder %s79, %s81
      %p85 = scmp.eq.s32.totalorder %s19, 0
      %p86 = por %p84, %p85
      %p87 = scmp.ne.s32.totalorder %s79, %s81
      %p88 = scmp.eq.s32.totalorder %s24, 1
      %p89 = por %p87, %p88
      %p90 = scmp.ne.s32.totalorder %s81, %s82
      %p91 = scmp.eq.s32.totalorder %s24, 0
      %p92 = por %p90, %p91
      %p93 = scmp.ne.s32.totalorder %s81, %s82
      %p94 = scmp.eq.s32.totalorder %s25, 1
      %p95 = por %p93, %p94
      %p97 = scmp.ne.s32.totalorder %s82, %s96
      %p98 = scmp.eq.s32.totalorder %s25, 0
      %p99 = por %p97, %p98
      %s101 = sadd.s32 %s100, 1
      %p104 = scmp.eq.s32.totalorder %s19, 1
      %p105 = scmp.ne.s32.totalorder %s100, %s102
      %p106 = scmp.eq.s32.totalorder %s19, 0
      %p107 = por %p105, %p106
      %p108 = scmp.ne.s32.totalorder %s100, %s102
      %p109 = scmp.eq.s32.totalorder %s24, 1
      %p110 = por %p108, %p109
      %p111 = scmp.ne.s32.totalorder %s102, %s103
      %p112 = scmp.eq.s32.totalorder %s24, 0
      %p113 = por %p111, %p112
      %p114 = scmp.ne.s32.totalorder %s102, %s103
      %p115 = scmp.eq.s32.totalorder %s25, 1
      %p116 = por %p114, %p115
      %p118 = scmp.ne.s32.totalorder %s103, %s117
      %p119 = scmp.eq.s32.totalorder %s25, 0
      %p120 = por %p118, %p119
      %s121 = ssub.s32 %s19, %s26
      %p122 = scmp.eq.s32.totalorder %s121, 0
      %s124 = sadd.s32 %s123, 1
      %s125 = scalar_select %p122, %s123, %s124
      %p128 = pneg %p122
      %p129 = scmp.eq.s32.totalorder %s19, 1
      %p130 = por %p128, %p129
      %p131 = scmp.ne.s32.totalorder %s123, %s126
      %p132 = scmp.eq.s32.totalorder %s19, 0
      %p133 = por %p131, %p132
      %p134 = scmp.ne.s32.totalorder %s123, %s126
      %p135 = scmp.eq.s32.totalorder %s24, 1
      %p136 = por %p134, %p135
      %p137 = scmp.ne.s32.totalorder %s126, %s127
      %p138 = scmp.eq.s32.totalorder %s24, 0
      %p139 = por %p137, %p138
      %p140 = scmp.ne.s32.totalorder %s126, %s127
      %p141 = scmp.eq.s32.totalorder %s25, 1
      %p142 = por %p140, %p141
      %p144 = scmp.ne.s32.totalorder %s127, %s143
      %p145 = scmp.eq.s32.totalorder %s25, 0
      %p146 = por %p144, %p145
      %p147 = scmp.le.s32.totalorder 1, %s19
      %p148 = scmp.lt.s32.totalorder %s19, 3
      %p149 = pnand %p147, %p148
      %p150 = pneg %p149
      // Predicated region
      $region9: #{tpu_custom_call.1} parent=5 // pred_check
        _
      $region10: #{tpu_custom_call.1} parent=5 // pred_check_branch
        %152 = sbr.rel (%p149) target = $region12
      $region11: #{tpu_custom_call.1} parent=5 // pred_region
        %s153 = ssub.s32 %s19, 1
        // Predicated region
        $region13: #{tpu_custom_call.1} parent=11 // pred_check
          %p154 = pneg %p92
        $region14: #{tpu_custom_call.1} parent=11 // pred_check_branch
          %156 = sbr.rel (%p154) target = $region16
        $region15: #{tpu_custom_call.1} parent=11 // pred_region
          %s158 = ssub.s32 512, 512
          %159 = vsyncadd [#allocation6], %s158
          %s160 = sshll.u32 [#allocation7], 4
          %s161 = int_to_ptr.vmem [resolvable:$true] %s160
          %166 = dma.hbm_to_vmem [thread:$0]  %s2, 512, %s161, [#allocation6], 128, 128, 8
        $region16: #{tpu_custom_call.1} parent=11 // pred_fallthru
          _
        // Predicated region
        $region17: #{tpu_custom_call.1} parent=11 // pred_check
          %p167 = pneg %p113
        $region18: #{tpu_custom_call.1} parent=11 // pred_check_branch
          %169 = sbr.rel (%p167) target = $region20
        $region19: #{tpu_custom_call.1} parent=11 // pred_region
          _
        $region20: #{tpu_custom_call.1} parent=11 // pred_fallthru
          _
      $region12: #{tpu_custom_call.1} parent=5 // pred_fallthru
        _
      %p170 = scmp.lt.s32.totalorder %s19, 2
      // Predicated region
      $region21: #{tpu_custom_call.1} parent=5 // pred_check
        %p171 = pneg %p170
      $region22: #{tpu_custom_call.1} parent=5 // pred_check_branch
        %173 = sbr.rel (%p171) target = $region24
      $region23: #{tpu_custom_call.1} parent=5 // pred_region
        // Predicated region
        $region25: #{tpu_custom_call.1} parent=23 // pred_check
          %p174 = pneg %p39
        $region26: #{tpu_custom_call.1} parent=23 // pred_check_branch
          %176 = sbr.rel (%p174) target = $region28
        $region27: #{tpu_custom_call.1} parent=23 // pred_region
          %s177 = sand.u32 %s29, 1
          %s178 = scalar_lea.sflag [#allocation3], %s177
          %s179 = sand.u32 %s29, 1
          %s180 = smul.addr %s179, 8
          %s181 = scalar_lea.vmem [#allocation2], %s180
          %s183 = ssub.s32 128, 128
          %184 = vsyncadd %s178, %s183
          %s185 = smul.addr %s19, 128
          %s186 = scalar_lea.hbm %s0, %s185
          %s188 = sshll.u32 %s181, 4
          %s189 = int_to_ptr.vmem [resolvable:$true] %s188
          %191 = dma.hbm_to_vmem [thread:$0]  %s186, 128, %s189, %s178
        $region28: #{tpu_custom_call.1} parent=23 // pred_fallthru
          _
        // Predicated region
        $region29: #{tpu_custom_call.1} parent=23 // pred_check
          %p192 = pneg %p65
        $region30: #{tpu_custom_call.1} parent=23 // pred_check_branch
          %194 = sbr.rel (%p192) target = $region32
        $region31: #{tpu_custom_call.1} parent=23 // pred_region
          %s195 = sand.u32 %s19, 1
          %s196 = scalar_lea.sflag [#allocation6], %s195
          %s197 = sand.u32 %s55, 1
          %s198 = smul.addr %s197, 8
          %s199 = scalar_lea.vmem [#allocation5], %s198
          %s201 = ssub.s32 128, 128
          %202 = vsyncadd %s196, %s201
          %s203 = smul.addr %s19, 128
          %s204 = scalar_lea.hbm %s1, %s203
          %s206 = sshll.u32 %s199, 4
          %s207 = int_to_ptr.vmem [resolvable:$true] %s206
          %209 = dma.hbm_to_vmem [thread:$0]  %s204, 128, %s207, %s196
        $region32: #{tpu_custom_call.1} parent=23 // pred_fallthru
          _
      $region24: #{tpu_custom_call.1} parent=5 // pred_fallthru
        _
      %p210 = scmp.le.s32.totalorder 1, %s19
      %p211 = scmp.lt.s32.totalorder %s19, 3
      %p212 = pnand %p210, %p211
      %p213 = pneg %p212
      // Predicated region
      $region33: #{tpu_custom_call.1} parent=5 // pred_check
        _
      $region34: #{tpu_custom_call.1} parent=5 // pred_check_branch
        %215 = sbr.rel (%p212) target = $region36
      $region35: #{tpu_custom_call.1} parent=5 // pred_region
        %s216 = ssub.s32 %s19, 1
        %s217 = sand.u32 %s32, 1
        %s218 = scalar_lea.sflag [#allocation3], %s217
        %s219 = sand.u32 %s32, 1
        %s220 = smul.addr %s219, 8
        %s221 = scalar_lea.vmem [#allocation2], %s220
        // Predicated region
        $region37: #{tpu_custom_call.1} parent=35 // pred_check
          %p222 = pneg %p45
        $region38: #{tpu_custom_call.1} parent=35 // pred_check_branch
          %224 = sbr.rel (%p222) target = $region40
        $region39: #{tpu_custom_call.1} parent=35 // pred_region
          %225 = dma.done %s218, 128
        $region40: #{tpu_custom_call.1} parent=35 // pred_fallthru
          _
        %s226 = sand.u32 %s24, 1
        %s227 = scalar_lea.sflag [#allocation6], %s226
        %s228 = sand.u32 %s58, 1
        %s229 = smul.addr %s228, 8
        %s230 = scalar_lea.vmem [#allocation5], %s229
        // Predicated region
        $region41: #{tpu_custom_call.1} parent=35 // pred_check
          %p231 = pneg %p71
        $region42: #{tpu_custom_call.1} parent=35 // pred_check_branch
          %233 = sbr.rel (%p231) target = $region44
        $region43: #{tpu_custom_call.1} parent=35 // pred_region
          %234 = dma.done %s227, 128
        $region44: #{tpu_custom_call.1} parent=35 // pred_fallthru
          _
        // Predicated region
        $region45: #{tpu_custom_call.1} parent=35 // pred_check
          %p235 = pneg %p92
        $region46: #{tpu_custom_call.1} parent=35 // pred_check_branch
          %237 = sbr.rel (%p235) target = $region48
        $region47: #{tpu_custom_call.1} parent=35 // pred_region
          %238 = dma.done [#allocation6], 512
        $region48: #{tpu_custom_call.1} parent=35 // pred_fallthru
          _
        %s239 = sand.u32 %s32, 1
        %s240 = scalar_lea.sflag [#allocation3], %s239
        %s241 = sand.u32 %s32, 1
        %s242 = smul.addr %s241, 8
        %s243 = scalar_lea.vmem [#allocation2], %s242
        %p244 = pneg %p45
        %p245 = pneg %p42
        %s246 = sand.u32 %s24, 1
        %s247 = scalar_lea.sflag [#allocation6], %s246
        %s248 = sand.u32 %s58, 1
        %s249 = smul.addr %s248, 8
        %s250 = scalar_lea.vmem [#allocation5], %s249
        %p251 = pneg %p71
        %p252 = pneg %p68
        %p253 = pneg %p92
        %p254 = pneg %p89
        %p255 = pneg %p113
        %p256 = pneg %p110
        %p257 = pneg %p139
        %p258 = pneg %p136
        %s259 = sand.u32 %s126, 1
        %s260 = scalar_lea.sflag [#allocation4], %s259
        %s261 = sand.u32 %s126, 1
        %s262 = smul.addr %s261, 8
        %s263 = scalar_lea.vmem [#allocation8], %s262
        %v264 = vld [vmem:[%s221] sm:$0xff]
        %v265 = vld [vmem:[#allocation7] sm:$0xff]
        %v266 = vld [vmem:[#allocation7 + $0x8] sm:$0xff]
        %v267 = vld [vmem:[#allocation7 + $0x10] sm:$0xff]
        %v268 = vld [vmem:[#allocation7 + $0x18] sm:$0xff]
        %v269 = vld [vmem:[%s3] sm:$0x7]
        %v270 = vlaneseq
        %v271 = vshrl.u32 %v270, 7
        %v272 = vsub.s32 0, %v271
        %v273 = vrot.slane %v269, %v272
        %vm274 = vcmask 261120
        %v276 = vsel %vm274, %v264, 0
        %278 = vmatprep.subr.mxu0 0.0
        %279 = vmatpush1.msra.mxu0 %v265
        %280 = vmatprep.subr.mxu0 0.0
        %281 = vmatpush1.msra.mxu0 %v266
        %282 = vmatprep.subr.mxu0 0.0
        %283 = vmatpush1.msra.mxu0 %v267
        %284 = vmatprep.subr.mxu0 0.0
        %285 = vmatpush1.msra.mxu0 %v268
        %286 = vmatprep.subr.mxu0 0.0
        %287 = vmatpush1.msra.mxu0 0.0
        %288 = vmatprep.subr.mxu0 0.0
        %289 = vmatpush1.msra.mxu0 0.0
        %290 = vmatprep.subr.mxu0 0.0
        %291 = vmatpush1.msra.mxu0 0.0
        %292 = vmatprep.subr.mxu0 0.0
        %293 = vmatpush1.msra.mxu0 0.0
        %294 = vmatprep.subr.mxu0 0.0
        %295 = vmatpush1.msra.mxu0 0.0
        %296 = vmatprep.subr.mxu0 0.0
        %297 = vmatpush1.msra.mxu0 0.0
        %298 = vmatprep.subr.mxu0 0.0
        %299 = vmatpush1.msra.mxu0 0.0
        %300 = vmatprep.subr.mxu0 0.0
        %301 = vmatpush1.msra.mxu0 0.0
        %302 = vmatprep.subr.mxu0 0.0
        %303 = vmatpush1.msra.mxu0 0.0
        %304 = vmatprep.subr.mxu0 0.0
        %305 = vmatpush1.msra.mxu0 0.0
        %306 = vmatprep.subr.mxu0 0.0
        %307 = vmatpush1.msra.mxu0 0.0
        %308 = vmatprep.subr.mxu0 0.0
        %309 = vmatpush1.msra.mxu0 0.0
        %310 = vmatprep.subr.mxu0 0.0
        %311 = vmatpush1.msra.mxu0 0.0
        %312 = vmatprep.subr.mxu0 0.0
        %313 = vmatpush1.msra.mxu0 0.0
        %314 = vmatprep.subr.mxu0 0.0
        %315 = vmatpush1.msra.mxu0 0.0
        %316 = vmatprep.subr.mxu0 0.0
        %317 = vmatpush1.msra.mxu0 0.0
        %318 = vmatprep.subr.mxu0 0.0
        %319 = vmatpush1.msra.mxu0 0.0
        %320 = vmatprep.subr.mxu0 0.0
        %321 = vmatpush1.msra.mxu0 0.0
        %322 = vmatprep.subr.mxu0 0.0
        %323 = vmatpush1.msra.mxu0 0.0
        %324 = vmatprep.subr.mxu0 0.0
        %325 = vmatpush1.msra.mxu0 0.0
        %326 = vmatprep.subr.mxu0 0.0
        %327 = vmatpush1.msra.mxu0 0.0
        %328 = vmatprep.subr.mxu0 0.0
        %329 = vmatpush1.msra.mxu0 0.0
        %330 = vmatprep.subr.mxu0 0.0
        %331 = vmatpush1.msra.mxu0 0.0
        %332 = vmatprep.subr.mxu0 0.0
        %333 = vmatpush1.msra.mxu0 0.0
        %334 = vmatprep.subr.mxu0 0.0
        %335 = vmatpush1.msra.mxu0 0.0
        %336 = vmatprep.subr.mxu0 0.0
        %337 = vmatpush1.msra.mxu0 0.0
        %338 = vmatprep.subr.mxu0 0.0
        %339 = vmatpush1.msra.mxu0 0.0
        %340 = vmatprep.subr.mxu0 0.0
        %341 = vmatpush1.msra.mxu0 0.0
        %342 = vmatprep.mubr.f32.mxu0 0.0
        %343 = vmatmul.mubr.f32.gmra.mrb[0].mxu0 %v276
        %v344 = vpop.f32.mrb[0].mxu0
        %v345 = vadd.f32 %v273, %v344
        %v346 = vpop.f32.mrb[0].mxu0
        %347 = vdwg.mxu0
        %v348 = vld [vmem:[%s230] sm:$0xff]
        %v349 = vadd.f32 %v345, %v348
        %v350 = vsel %vm274, %v349, 0.0
        %351 = vadd.xlane.f32.xlu0 %v350
        %v352 = vpop.xlane.xlu0 %351
        %v353 = vrcp.pop 32.0
        %v354 = vmul.f32 %v352, %v353
        %v355 = vsub.f32 %v349, %v354
        %v356 = vmul.f32 %v355, %v355
        %v357 = vsel %vm274, %v356, 0.0
        %358 = vadd.xlane.f32.xlu0 %v357
        %v359 = vpop.xlane.xlu0 %358
        %v360 = vmul.f32 %v359, %v353
        %v361 = vadd.f32 %v360, 1e-12
        %v362 = vrsqrt.pop %v361
        %v363 = vmul.f32 %v355, %v362
        %v364 = vlaneseq
        %v365 = vshrl.u32 %v364, 7
        %v366 = vsub.s32 1, %v365
        %v367 = vrot.slane %v269, %v366
        %v368 = vmul.f32 %v363, %v367
        %v369 = vlaneseq
        %v370 = vshrl.u32 %v369, 7
        %v371 = vsub.s32 2, %v370
        %v372 = vrot.slane %v269, %v371
        %v373 = vadd.f32 %v368, %v372
        %374 = vst.msk [vmem:[%s263] sm:$0xff] %vm274, %v373
        %s375 = sand.u32 %s126, 1
        %s376 = scalar_lea.sflag [#allocation4], %s375
        %s377 = sand.u32 %s126, 1
        %s378 = smul.addr %s377, 8
        %s379 = scalar_lea.vmem [#allocation8], %s378
        // Predicated region
        $region49: #{tpu_custom_call.1} parent=35 // pred_check
          %p380 = pneg %p136
        $region50: #{tpu_custom_call.1} parent=35 // pred_check_branch
          %382 = sbr.rel (%p380) target = $region52
        $region51: #{tpu_custom_call.1} parent=35 // pred_region
          %s384 = ssub.s32 128, 128
          %385 = vsyncadd %s376, %s384
          %s386 = smul.addr %s24, 128
          %s387 = scalar_lea.hbm %s4, %s386
          %s389 = sshll.u32 %s379, 4
          %s390 = int_to_ptr.vmem [resolvable:$true] %s389
          %392 = dma.vmem_to_hbm [thread:$0]  %s390, 128, %s387, %s376
        $region52: #{tpu_custom_call.1} parent=35 // pred_fallthru
          _
      $region36: #{tpu_custom_call.1} parent=5 // pred_fallthru
        _
      %p393 = scmp.le.s32.totalorder 2, %s19
      // Predicated region
      $region53: #{tpu_custom_call.1} parent=5 // pred_check
        %p394 = pneg %p393
      $region54: #{tpu_custom_call.1} parent=5 // pred_check_branch
        %396 = sbr.rel (%p394) target = $region56
      $region55: #{tpu_custom_call.1} parent=5 // pred_region
        %s397 = ssub.s32 %s19, 2
        // Predicated region
        $region57: #{tpu_custom_call.1} parent=55 // pred_check
          %p398 = pneg %p142
        $region58: #{tpu_custom_call.1} parent=55 // pred_check_branch
          %400 = sbr.rel (%p398) target = $region60
        $region59: #{tpu_custom_call.1} parent=55 // pred_region
          %s401 = sand.u32 %s127, 1
          %s402 = scalar_lea.sflag [#allocation4], %s401
          %s403 = sand.u32 %s127, 1
          %s404 = smul.addr %s403, 8
          %s405 = scalar_lea.vmem [#allocation8], %s404
          %406 = dma.done %s402, 128
        $region60: #{tpu_custom_call.1} parent=55 // pred_fallthru
          _
      $region56: #{tpu_custom_call.1} parent=5 // pred_fallthru
        _
    $region6: #{tpu_custom_call.1} parent=1 // loop_footer
      %s23 = sadd.s32 1, %s19
    $region7: #{tpu_custom_call.1} parent=1 // loop_footer_branch
      %18 = sbr.rel target = $region3
    $region8: #{tpu_custom_call.1} parent=1 // loop_exit
      _
    %407 = vsyncpa [#allocation3], 1
    %s408 = scalar_lea.sflag [#allocation3], 1
    %409 = vsyncpa %s408, 1
    %410 = vsyncpa [#allocation6], 1
    %s411 = scalar_lea.sflag [#allocation6], 1
    %412 = vsyncpa %s411, 1
    %413 = vsyncpa [#allocation4], 1
    %s414 = scalar_lea.sflag [#allocation4], 1
    %415 = vsyncpa %s414, 1

// kernel: tpu_custom_call.1
$region0: #{tpu_custom_call.1}
  #allocation0 [shape = 'u32[]', space=smem, size = 0x4, offset = 0x4, fixed_abs, tag = 'smem constant byte address 0x4 - core index']
  #allocation1 [shape = 'u32[144,128]{1,0:T(1,128)}', space=vmem, size = 0x12000, scoped, tag = 'internal scratch']
  %s0 = inlined_call_operand.hbm [shape: f32[16,32], index: 0, kind: input, shape index: {}]
  %s1 = inlined_call_operand.hbm [shape: f32[16,32], index: 1, kind: input, shape index: {}]
  %s2 = inlined_call_operand.hbm [shape: f32[32,32], index: 2, kind: input, shape index: {}]
  %s3 = inlined_call_operand.vmem [shape: f32[3,32], index: 3, kind: input, shape index: {}]
  %s4 = inlined_call_operand.hbm [shape: f32[16,32], index: 4, kind: output, shape index: {}]
  %s5 = sld [smem:[#allocation0]]
  $region61: #{tpu_custom_call.1} parent=0
    _
  %s7 = ssub.s32 1, %s5
  %s8 = scalar_select 0, %s7, %s5
  $region1: #{tpu_custom_call.1} parent=0
    #allocation2 [shape = 'u8[8192]{0}', space=vmem, size = 0x2000, scoped, tag = 'input window, operand 0']
    #allocation3 [shape = 's32[2]{0}', space=sflag, size = 0x8, scoped, tag = 'scoped memory for tpu_custom_call.1']
    #allocation4 [shape = 's32[2]{0}', space=sflag, size = 0x8, scoped, tag = 'scoped memory for tpu_custom_call.1']
    #allocation5 [shape = 'u8[8192]{0}', space=vmem, size = 0x2000, scoped, tag = 'input window, operand 1']
    #allocation6 [shape = 's32[2]{0}', space=sflag, size = 0x8, scoped, tag = 'scoped memory for tpu_custom_call.1']
    #allocation7 [shape = 'u8[16384]{0}', space=vmem, size = 0x4000, scoped, tag = 'input window, operand 2, single buffered']
    #allocation8 [shape = 'u8[8192]{0}', space=vmem, size = 0x2000, scoped, tag = 'output window, operand 0']
    %9 = vsyncpa [#allocation3], 0
    %s10 = scalar_lea.sflag [#allocation3], 1
    %11 = vsyncpa %s10, 0
    %12 = vsyncpa [#allocation6], 0
    %s13 = scalar_lea.sflag [#allocation6], 1
    %14 = vsyncpa %s13, 0
    %15 = vsyncpa [#allocation4], 0
    %s16 = scalar_lea.sflag [#allocation4], 1
    %17 = vsyncpa %s16, 0
    loop: start=0, step=1, limit=4
    $region2: #{tpu_custom_call.1} parent=1 // loop_pre_header
      _
    $region3: #{tpu_custom_call.1} parent=1 // loop_header
      %s19 = sphi 0, %s23
      %p20 = scmp.ge.s32.totalorder %s19, 4
      %s29 = sphi 0, %s31
      %s32 = sphi 0, %s29
      %s33 = sphi 0, %s32
      %s49 = sphi 0, %s33
      %s55 = sphi 0, %s57
      %s58 = sphi 0, %s55
      %s59 = sphi 0, %s58
      %s75 = sphi 0, %s59
      %s79 = sphi 0, %s79
      %s81 = sphi 0, %s79
      %s82 = sphi 0, %s81
      %s96 = sphi 0, %s82
      %s100 = sphi 0, %s100
      %s102 = sphi 0, %s100
      %s103 = sphi 0, %s102
      %s117 = sphi 0, %s103
      %s123 = sphi 0, %s125
      %s126 = sphi 0, %s123
      %s127 = sphi 0, %s126
      %s143 = sphi 0, %s127
    $region4: #{tpu_custom_call.1} parent=1 // loop_header_branch
      %22 = sbr.rel (%p20) target = $region8
    $region5: #{tpu_custom_call.1} parent=1 // loop_body
      %s24 = ssub.s32 %s19, 1
      %s25 = ssub.s32 %s19, 2
      %s26 = sadd.s32 %s19, 1
      %s27 = ssub.s32 %s19, %s26
      %p28 = scmp.eq.s32.totalorder %s27, 0
      %s30 = sadd.s32 %s29, 1
      %s31 = scalar_select %p28, %s29, %s30
      %p34 = pneg %p28
      %p35 = scmp.eq.s32.totalorder %s19, 1
      %p36 = por %p34, %p35
      %p37 = scmp.ne.s32.totalorder %s29, %s32
      %p38 = scmp.eq.s32.totalorder %s19, 0
      %p39 = por %p37, %p38
      %p40 = scmp.ne.s32.totalorder %s29, %s32
      %p41 = scmp.eq.s32.totalorder %s24, 1
      %p42 = por %p40, %p41
      %p43 = scmp.ne.s32.totalorder %s32, %s33
      %p44 = scmp.eq.s32.totalorder %s24, 0
      %p45 = por %p43, %p44
      %p46 = scmp.ne.s32.totalorder %s32, %s33
      %p47 = scmp.eq.s32.totalorder %s25, 1
      %p48 = por %p46, %p47
      %p50 = scmp.ne.s32.totalorder %s33, %s49
      %p51 = scmp.eq.s32.totalorder %s25, 0
      %p52 = por %p50, %p51
      %s53 = ssub.s32 %s19, %s26
      %p54 = scmp.eq.s32.totalorder %s53, 0
      %s56 = sadd.s32 %s55, 1
      %s57 = scalar_select %p54, %s55, %s56
      %p60 = pneg %p54
      %p61 = scmp.eq.s32.totalorder %s19, 1
      %p62 = por %p60, %p61
      %p63 = scmp.ne.s32.totalorder %s55, %s58
      %p64 = scmp.eq.s32.totalorder %s19, 0
      %p65 = por %p63, %p64
      %p66 = scmp.ne.s32.totalorder %s55, %s58
      %p67 = scmp.eq.s32.totalorder %s24, 1
      %p68 = por %p66, %p67
      %p69 = scmp.ne.s32.totalorder %s58, %s59
      %p70 = scmp.eq.s32.totalorder %s24, 0
      %p71 = por %p69, %p70
      %p72 = scmp.ne.s32.totalorder %s58, %s59
      %p73 = scmp.eq.s32.totalorder %s25, 1
      %p74 = por %p72, %p73
      %p76 = scmp.ne.s32.totalorder %s59, %s75
      %p77 = scmp.eq.s32.totalorder %s25, 0
      %p78 = por %p76, %p77
      %s80 = sadd.s32 %s79, 1
      %p83 = scmp.eq.s32.totalorder %s19, 1
      %p84 = scmp.ne.s32.totalorder %s79, %s81
      %p85 = scmp.eq.s32.totalorder %s19, 0
      %p86 = por %p84, %p85
      %p87 = scmp.ne.s32.totalorder %s79, %s81
      %p88 = scmp.eq.s32.totalorder %s24, 1
      %p89 = por %p87, %p88
      %p90 = scmp.ne.s32.totalorder %s81, %s82
      %p91 = scmp.eq.s32.totalorder %s24, 0
      %p92 = por %p90, %p91
      %p93 = scmp.ne.s32.totalorder %s81, %s82
      %p94 = scmp.eq.s32.totalorder %s25, 1
      %p95 = por %p93, %p94
      %p97 = scmp.ne.s32.totalorder %s82, %s96
      %p98 = scmp.eq.s32.totalorder %s25, 0
      %p99 = por %p97, %p98
      %s101 = sadd.s32 %s100, 1
      %p104 = scmp.eq.s32.totalorder %s19, 1
      %p105 = scmp.ne.s32.totalorder %s100, %s102
      %p106 = scmp.eq.s32.totalorder %s19, 0
      %p107 = por %p105, %p106
      %p108 = scmp.ne.s32.totalorder %s100, %s102
      %p109 = scmp.eq.s32.totalorder %s24, 1
      %p110 = por %p108, %p109
      %p111 = scmp.ne.s32.totalorder %s102, %s103
      %p112 = scmp.eq.s32.totalorder %s24, 0
      %p113 = por %p111, %p112
      %p114 = scmp.ne.s32.totalorder %s102, %s103
      %p115 = scmp.eq.s32.totalorder %s25, 1
      %p116 = por %p114, %p115
      %p118 = scmp.ne.s32.totalorder %s103, %s117
      %p119 = scmp.eq.s32.totalorder %s25, 0
      %p120 = por %p118, %p119
      %s121 = ssub.s32 %s19, %s26
      %p122 = scmp.eq.s32.totalorder %s121, 0
      %s124 = sadd.s32 %s123, 1
      %s125 = scalar_select %p122, %s123, %s124
      %p128 = pneg %p122
      %p129 = scmp.eq.s32.totalorder %s19, 1
      %p130 = por %p128, %p129
      %p131 = scmp.ne.s32.totalorder %s123, %s126
      %p132 = scmp.eq.s32.totalorder %s19, 0
      %p133 = por %p131, %p132
      %p134 = scmp.ne.s32.totalorder %s123, %s126
      %p135 = scmp.eq.s32.totalorder %s24, 1
      %p136 = por %p134, %p135
      %p137 = scmp.ne.s32.totalorder %s126, %s127
      %p138 = scmp.eq.s32.totalorder %s24, 0
      %p139 = por %p137, %p138
      %p140 = scmp.ne.s32.totalorder %s126, %s127
      %p141 = scmp.eq.s32.totalorder %s25, 1
      %p142 = por %p140, %p141
      %p144 = scmp.ne.s32.totalorder %s127, %s143
      %p145 = scmp.eq.s32.totalorder %s25, 0
      %p146 = por %p144, %p145
      %p147 = scmp.le.s32.totalorder 1, %s19
      %p148 = scmp.lt.s32.totalorder %s19, 3
      %p149 = pnand %p147, %p148
      %p150 = pneg %p149
      // Predicated region
      $region9: #{tpu_custom_call.1} parent=5 // pred_check
        _
      $region10: #{tpu_custom_call.1} parent=5 // pred_check_branch
        %152 = sbr.rel (%p149) target = $region12
      $region11: #{tpu_custom_call.1} parent=5 // pred_region
        %s153 = ssub.s32 %s19, 1
        // Predicated region
        $region13: #{tpu_custom_call.1} parent=11 // pred_check
          %p154 = pneg %p92
        $region14: #{tpu_custom_call.1} parent=11 // pred_check_branch
          %156 = sbr.rel (%p154) target = $region16
        $region15: #{tpu_custom_call.1} parent=11 // pred_region
          %s158 = ssub.s32 512, 512
          %159 = vsyncadd [#allocation6], %s158
          %s160 = sshll.u32 [#allocation7], 4
          %s161 = int_to_ptr.vmem [resolvable:$true] %s160
          %166 = dma.hbm_to_vmem [thread:$0]  %s2, 512, %s161, [#allocation6], 128, 128, 8
        $region16: #{tpu_custom_call.1} parent=11 // pred_fallthru
          _
        // Predicated region
        $region17: #{tpu_custom_call.1} parent=11 // pred_check
          %p167 = pneg %p113
        $region18: #{tpu_custom_call.1} parent=11 // pred_check_branch
          %169 = sbr.rel (%p167) target = $region20
        $region19: #{tpu_custom_call.1} parent=11 // pred_region
          _
        $region20: #{tpu_custom_call.1} parent=11 // pred_fallthru
          _
      $region12: #{tpu_custom_call.1} parent=5 // pred_fallthru
        _
      %p170 = scmp.lt.s32.totalorder %s19, 2
      // Predicated region
      $region21: #{tpu_custom_call.1} parent=5 // pred_check
        %p171 = pneg %p170
      $region22: #{tpu_custom_call.1} parent=5 // pred_check_branch
        %173 = sbr.rel (%p171) target = $region24
      $region23: #{tpu_custom_call.1} parent=5 // pred_region
        // Predicated region
        $region25: #{tpu_custom_call.1} parent=23 // pred_check
          %p174 = pneg %p39
        $region26: #{tpu_custom_call.1} parent=23 // pred_check_branch
          %176 = sbr.rel (%p174) target = $region28
        $region27: #{tpu_custom_call.1} parent=23 // pred_region
          %s177 = sand.u32 %s29, 1
          %s178 = scalar_lea.sflag [#allocation3], %s177
          %s179 = sand.u32 %s29, 1
          %s180 = smul.addr %s179, 8
          %s181 = scalar_lea.vmem [#allocation2], %s180
          %s183 = ssub.s32 128, 128
          %184 = vsyncadd %s178, %s183
          %s185 = smul.addr %s19, 128
          %s186 = scalar_lea.hbm %s0, %s185
          %s188 = sshll.u32 %s181, 4
          %s189 = int_to_ptr.vmem [resolvable:$true] %s188
          %191 = dma.hbm_to_vmem [thread:$0]  %s186, 128, %s189, %s178
        $region28: #{tpu_custom_call.1} parent=23 // pred_fallthru
          _
        // Predicated region
        $region29: #{tpu_custom_call.1} parent=23 // pred_check
          %p192 = pneg %p65
        $region30: #{tpu_custom_call.1} parent=23 // pred_check_branch
          %194 = sbr.rel (%p192) target = $region32
        $region31: #{tpu_custom_call.1} parent=23 // pred_region
          %s195 = sand.u32 %s19, 1
          %s196 = scalar_lea.sflag [#allocation6], %s195
          %s197 = sand.u32 %s55, 1
          %s198 = smul.addr %s197, 8
          %s199 = scalar_lea.vmem [#allocation5], %s198
          %s201 = ssub.s32 128, 128
          %202 = vsyncadd %s196, %s201
          %s203 = smul.addr %s19, 128
          %s204 = scalar_lea.hbm %s1, %s203
          %s206 = sshll.u32 %s199, 4
          %s207 = int_to_ptr.vmem [resolvable:$true] %s206
          %209 = dma.hbm_to_vmem [thread:$0]  %s204, 128, %s207, %s196
        $region32: #{tpu_custom_call.1} parent=23 // pred_fallthru
          _
      $region24: #{tpu_custom_call.1} parent=5 // pred_fallthru
        _
      %p210 = scmp.le.s32.totalorder 1, %s19
      %p211 = scmp.lt.s32.totalorder %s19, 3
      %p212 = pnand %p210, %p211
      %p213 = pneg %p212
      // Predicated region
      $region33: #{tpu_custom_call.1} parent=5 // pred_check
        _
      $region34: #{tpu_custom_call.1} parent=5 // pred_check_branch
        %215 = sbr.rel (%p212) target = $region36
      $region35: #{tpu_custom_call.1} parent=5 // pred_region
        %s216 = ssub.s32 %s19, 1
        %s217 = sand.u32 %s32, 1
        %s218 = scalar_lea.sflag [#allocation3], %s217
        %s219 = sand.u32 %s32, 1
        %s220 = smul.addr %s219, 8
        %s221 = scalar_lea.vmem [#allocation2], %s220
        // Predicated region
        $region37: #{tpu_custom_call.1} parent=35 // pred_check
          %p222 = pneg %p45
        $region38: #{tpu_custom_call.1} parent=35 // pred_check_branch
          %224 = sbr.rel (%p222) target = $region40
        $region39: #{tpu_custom_call.1} parent=35 // pred_region
          %225 = dma.done %s218, 128
        $region40: #{tpu_custom_call.1} parent=35 // pred_fallthru
          _
        %s226 = sand.u32 %s24, 1
        %s227 = scalar_lea.sflag [#allocation6], %s226
        %s228 = sand.u32 %s58, 1
        %s229 = smul.addr %s228, 8
        %s230 = scalar_lea.vmem [#allocation5], %s229
        // Predicated region
        $region41: #{tpu_custom_call.1} parent=35 // pred_check
          %p231 = pneg %p71
        $region42: #{tpu_custom_call.1} parent=35 // pred_check_branch
          %233 = sbr.rel (%p231) target = $region44
        $region43: #{tpu_custom_call.1} parent=35 // pred_region
          %234 = dma.done %s227, 128
        $region44: #{tpu_custom_call.1} parent=35 // pred_fallthru
          _
        // Predicated region
        $region45: #{tpu_custom_call.1} parent=35 // pred_check
          %p235 = pneg %p92
        $region46: #{tpu_custom_call.1} parent=35 // pred_check_branch
          %237 = sbr.rel (%p235) target = $region48
        $region47: #{tpu_custom_call.1} parent=35 // pred_region
          %238 = dma.done [#allocation6], 512
        $region48: #{tpu_custom_call.1} parent=35 // pred_fallthru
          _
        %s239 = sand.u32 %s32, 1
        %s240 = scalar_lea.sflag [#allocation3], %s239
        %s241 = sand.u32 %s32, 1
        %s242 = smul.addr %s241, 8
        %s243 = scalar_lea.vmem [#allocation2], %s242
        %p244 = pneg %p45
        %p245 = pneg %p42
        %s246 = sand.u32 %s24, 1
        %s247 = scalar_lea.sflag [#allocation6], %s246
        %s248 = sand.u32 %s58, 1
        %s249 = smul.addr %s248, 8
        %s250 = scalar_lea.vmem [#allocation5], %s249
        %p251 = pneg %p71
        %p252 = pneg %p68
        %p253 = pneg %p92
        %p254 = pneg %p89
        %p255 = pneg %p113
        %p256 = pneg %p110
        %p257 = pneg %p139
        %p258 = pneg %p136
        %s259 = sand.u32 %s126, 1
        %s260 = scalar_lea.sflag [#allocation4], %s259
        %s261 = sand.u32 %s126, 1
        %s262 = smul.addr %s261, 8
        %s263 = scalar_lea.vmem [#allocation8], %s262
        %v264 = vld [vmem:[%s221] sm:$0xff]
        %v265 = vld [vmem:[#allocation7] sm:$0xff]
        %v266 = vld [vmem:[#allocation7 + $0x8] sm:$0xff]
        %v267 = vld [vmem:[#allocation7 + $0x10] sm:$0xff]
        %v268 = vld [vmem:[#allocation7 + $0x18] sm:$0xff]
        %v269 = vld [vmem:[%s3] sm:$0x7]
        %v270 = vlaneseq
        %v271 = vshrl.u32 %v270, 7
        %v272 = vsub.s32 0, %v271
        %v273 = vrot.slane %v269, %v272
        %vm274 = vcmask 261120
        %v276 = vsel %vm274, %v264, 0
        %278 = vmatprep.subr.mxu0 0.0
        %279 = vmatpush1.msra.mxu0 %v265
        %280 = vmatprep.subr.mxu0 0.0
        %281 = vmatpush1.msra.mxu0 %v266
        %282 = vmatprep.subr.mxu0 0.0
        %283 = vmatpush1.msra.mxu0 %v267
        %284 = vmatprep.subr.mxu0 0.0
        %285 = vmatpush1.msra.mxu0 %v268
        %286 = vmatprep.subr.mxu0 0.0
        %287 = vmatpush1.msra.mxu0 0.0
        %288 = vmatprep.subr.mxu0 0.0
        %289 = vmatpush1.msra.mxu0 0.0
        %290 = vmatprep.subr.mxu0 0.0
        %291 = vmatpush1.msra.mxu0 0.0
        %292 = vmatprep.subr.mxu0 0.0
        %293 = vmatpush1.msra.mxu0 0.0
        %294 = vmatprep.subr.mxu0 0.0
        %295 = vmatpush1.msra.mxu0 0.0
        %296 = vmatprep.subr.mxu0 0.0
        %297 = vmatpush1.msra.mxu0 0.0
        %298 = vmatprep.subr.mxu0 0.0
        %299 = vmatpush1.msra.mxu0 0.0
        %300 = vmatprep.subr.mxu0 0.0
        %301 = vmatpush1.msra.mxu0 0.0
        %302 = vmatprep.subr.mxu0 0.0
        %303 = vmatpush1.msra.mxu0 0.0
        %304 = vmatprep.subr.mxu0 0.0
        %305 = vmatpush1.msra.mxu0 0.0
        %306 = vmatprep.subr.mxu0 0.0
        %307 = vmatpush1.msra.mxu0 0.0
        %308 = vmatprep.subr.mxu0 0.0
        %309 = vmatpush1.msra.mxu0 0.0
        %310 = vmatprep.subr.mxu0 0.0
        %311 = vmatpush1.msra.mxu0 0.0
        %312 = vmatprep.subr.mxu0 0.0
        %313 = vmatpush1.msra.mxu0 0.0
        %314 = vmatprep.subr.mxu0 0.0
        %315 = vmatpush1.msra.mxu0 0.0
        %316 = vmatprep.subr.mxu0 0.0
        %317 = vmatpush1.msra.mxu0 0.0
        %318 = vmatprep.subr.mxu0 0.0
        %319 = vmatpush1.msra.mxu0 0.0
        %320 = vmatprep.subr.mxu0 0.0
        %321 = vmatpush1.msra.mxu0 0.0
        %322 = vmatprep.subr.mxu0 0.0
        %323 = vmatpush1.msra.mxu0 0.0
        %324 = vmatprep.subr.mxu0 0.0
        %325 = vmatpush1.msra.mxu0 0.0
        %326 = vmatprep.subr.mxu0 0.0
        %327 = vmatpush1.msra.mxu0 0.0
        %328 = vmatprep.subr.mxu0 0.0
        %329 = vmatpush1.msra.mxu0 0.0
        %330 = vmatprep.subr.mxu0 0.0
        %331 = vmatpush1.msra.mxu0 0.0
        %332 = vmatprep.subr.mxu0 0.0
        %333 = vmatpush1.msra.mxu0 0.0
        %334 = vmatprep.subr.mxu0 0.0
        %335 = vmatpush1.msra.mxu0 0.0
        %336 = vmatprep.subr.mxu0 0.0
        %337 = vmatpush1.msra.mxu0 0.0
        %338 = vmatprep.subr.mxu0 0.0
        %339 = vmatpush1.msra.mxu0 0.0
        %340 = vmatprep.subr.mxu0 0.0
        %341 = vmatpush1.msra.mxu0 0.0
        %342 = vmatprep.mubr.f32.mxu0 0.0
        %343 = vmatmul.mubr.f32.gmra.mrb[0].mxu0 %v276
        %v344 = vpop.f32.mrb[0].mxu0
        %v345 = vadd.f32 %v273, %v344
        %v346 = vpop.f32.mrb[0].mxu0
        %347 = vdwg.mxu0
        %v348 = vld [vmem:[%s230] sm:$0xff]
        %v349 = vadd.f32 %v345, %v348
        %v350 = vsel %vm274, %v349, 0.0
        %351 = vadd.xlane.f32.xlu0 %v350
        %v352 = vpop.xlane.xlu0 %351
        %v353 = vrcp.pop 32.0
        %v354 = vmul.f32 %v352, %v353
        %v355 = vsub.f32 %v349, %v354
        %v356 = vmul.f32 %v355, %v355
        %v357 = vsel %vm274, %v356, 0.0
        %358 = vadd.xlane.f32.xlu0 %v357
        %v359 = vpop.xlane.xlu0 %358
        %v360 = vmul.f32 %v359, %v353
        %v361 = vadd.f32 %v360, 1e-12
        %v362 = vrsqrt.pop %v361
        %v363 = vmul.f32 %v355, %v362
        %v364 = vlaneseq
        %v365 = vshrl.u32 %v364, 7
        %v366 = vsub.s32 1, %v365
        %v367 = vrot.slane %v269, %v366
        %v368 = vmul.f32 %v363, %v367
        %v369 = vlaneseq
        %v370 = vshrl.u32 %v369, 7
        %v371 = vsub.s32 2, %v370
        %v372 = vrot.slane %v269, %v371
        %v373 = vadd.f32 %v368, %v372
        %374 = vst.msk [vmem:[%s263] sm:$0xff] %vm274, %v373
        %s375 = sand.u32 %s126, 1
        %s376 = scalar_lea.sflag [#allocation4], %s375
        %s377 = sand.u32 %s126, 1
        %s378 = smul.addr %s377, 8
        %s379 = scalar_lea.vmem [#allocation8], %s378
        // Predicated region
        $region49: #{tpu_custom_call.1} parent=35 // pred_check
          %p380 = pneg %p136
        $region50: #{tpu_custom_call.1} parent=35 // pred_check_branch
          %382 = sbr.rel (%p380) target = $region52
        $region51: #{tpu_custom_call.1} parent=35 // pred_region
          %s384 = ssub.s32 128, 128
          %385 = vsyncadd %s376, %s384
          %s386 = smul.addr %s24, 128
          %s387 = scalar_lea.hbm %s4, %s386
          %s389 = sshll.u32 %s379, 4
          %s390 = int_to_ptr.vmem [resolvable:$true] %s389
          %392 = dma.vmem_to_hbm [thread:$0]  %s390, 128, %s387, %s376
        $region52: #{tpu_custom_call.1} parent=35 // pred_fallthru
          _
      $region36: #{tpu_custom_call.1} parent=5 // pred_fallthru
        _
      %p393 = scmp.le.s32.totalorder 2, %s19
      // Predicated region
      $region53: #{tpu_custom_call.1} parent=5 // pred_check
        %p394 = pneg %p393
      $region54: #{tpu_custom_call.1} parent=5 // pred_check_branch
        %396 = sbr.rel (%p394) target = $region56
      $region55: #{tpu_custom_call.1} parent=5 // pred_region
        %s397 = ssub.s32 %s19, 2
        // Predicated region
        $region57: #{tpu_custom_call.1} parent=55 // pred_check
          %p398 = pneg %p142
        $region58: #{tpu_custom_call.1} parent=55 // pred_check_branch
          %400 = sbr.rel (%p398) target = $region60
        $region59: #{tpu_custom_call.1} parent=55 // pred_region
          %s401 = sand.u32 %s127, 1
          %s402 = scalar_lea.sflag [#allocation4], %s401
          %s403 = sand.u32 %s127, 1
          %s404 = smul.addr %s403, 8
          %s405 = scalar_lea.vmem [#allocation8], %s404
          %406 = dma.done %s402, 128
        $region60: #{tpu_custom_call.1} parent=55 // pred_fallthru
          _
      $region56: #{tpu_custom_call.1} parent=5 // pred_fallthru
        _
    $region6: #{tpu_custom_call.1} parent=1 // loop_footer
      %s23 = sadd.s32 1, %s19
    $region7: #{tpu_custom_call.1} parent=1 // loop_footer_branch
      %18 = sbr.rel target = $region3
    $region8: #{tpu_custom_call.1} parent=1 // loop_exit
      _
    %407 = vsyncpa [#allocation3], 1
    %s408 = scalar_lea.sflag [#allocation3], 1
    %409 = vsyncpa %s408, 1
    %410 = vsyncpa [#allocation6], 1
    %s411 = scalar_lea.sflag [#allocation6], 1
    %412 = vsyncpa %s411, 1
    %413 = vsyncpa [#allocation4], 1
    %s414 = scalar_lea.sflag [#allocation4], 1
    %415 = vsyncpa %s414, 1

</llo_original>
